<compile_context>
chip_gen: v5e
topology: v5e:2x2
jax: 0.10.0
libtpu: 0.0.40
codegen_flags: <defaults>
</compile_context>

<pallas_src>
import jax
import jax.numpy as jnp
from jax.experimental import pallas as pl
from jax.experimental.pallas import tpu as pltpu

IN1, OUT1 = 16, 32   # lin1: Linear(16, 32)
IN2, OUT2 = 8, 16    # lin2: Linear(8, 16)
ROW_TILE = 1024      # max rows per grid step (double-buffered tile < 1 MiB)


def _round_up(n, m):
    return ((n + m - 1) // m) * m


def _net1_kernel(x_ref, w1_ref, b1_ref, e_ref, w2_ref, b2_ref, xo_ref, eo_ref):
    # y = x @ W^T + b  (weights pre-transposed to [in, out] at init time)
    xo_ref[...] = (
        jnp.dot(x_ref[...], w1_ref[...], preferred_element_type=jnp.float32)
        + b1_ref[...]
    )
    eo_ref[...] = (
        jnp.dot(e_ref[...], w2_ref[...], preferred_element_type=jnp.float32)
        + b2_ref[...]
    )


def init_params(key):
    """PyTorch-Linear-style init, but stored pre-transposed ([in, out]) with
    bias as a [1, out] row so the forward pass does zero layout glue."""
    k1, k2, k3, k4 = jax.random.split(key, 4)
    lim1 = 1.0 / jnp.sqrt(float(IN1))
    w1t = jax.random.uniform(k1, (IN1, OUT1), jnp.float32, -lim1, lim1)
    b1 = jax.random.uniform(k2, (1, OUT1), jnp.float32, -lim1, lim1)
    lim2 = 1.0 / jnp.sqrt(float(IN2))
    w2t = jax.random.uniform(k3, (IN2, OUT2), jnp.float32, -lim2, lim2)
    b2 = jax.random.uniform(k4, (1, OUT2), jnp.float32, -lim2, lim2)
    return (w1t, b1), (w2t, b2)


def net1_forward(x, edge_attr, params):
    (w1t, b1), (w2t, b2) = params
    n = x.shape[0]
    e = edge_attr.shape[0]

    # Common padded row count so one row-grid drives both matmuls.
    rows = max(n, e)
    tile = min(ROW_TILE, _round_up(rows, 8))
    r = _round_up(rows, tile)
    xp = x if r == n else jnp.zeros((r, IN1), x.dtype).at[:n, :].set(x)
    ep = edge_attr if r == e else jnp.zeros((r, IN2), edge_attr.dtype).at[:e, :].set(edge_attr)

    grid = (pl.cdiv(r, tile),)

    xo, eo = pl.pallas_call(
        _net1_kernel,
        out_shape=(
            jax.ShapeDtypeStruct((r, OUT1), jnp.float32),
            jax.ShapeDtypeStruct((r, OUT2), jnp.float32),
        ),
        grid=grid,
        in_specs=[
            pl.BlockSpec((tile, IN1), lambda i: (i, 0)),    # x rows (pipelined)
            pl.BlockSpec((IN1, OUT1), lambda i: (0, 0)),    # w1^T resident
            pl.BlockSpec((1, OUT1), lambda i: (0, 0)),      # b1 resident
            pl.BlockSpec((tile, IN2), lambda i: (i, 0)),    # edge rows (pipelined)
            pl.BlockSpec((IN2, OUT2), lambda i: (0, 0)),    # w2^T resident
            pl.BlockSpec((1, OUT2), lambda i: (0, 0)),      # b2 resident
        ],
        out_specs=(
            pl.BlockSpec((tile, OUT1), lambda i: (i, 0)),
            pl.BlockSpec((tile, OUT2), lambda i: (i, 0)),
        ),
        compiler_params=pltpu.CompilerParams(
            dimension_semantics=("parallel",),
        ),
    )(xp, w1t, b1, ep, w2t, b2)

    x_out = xo if r == n else xo[:n]
    e_out = eo if r == e else eo[:e]
    return x_out, e_out


if __name__ == "__main__":
    key = jax.random.PRNGKey(0)
    k_param, k_x, k_e = jax.random.split(key, 3)

    params = init_params(k_param)

    # Small shapes consistent with the module: node feat dim 16, edge feat dim 8.
    x = jax.random.normal(k_x, (8, IN1), jnp.float32)          # [num_nodes=8, 16]
    edge_attr = jax.random.normal(k_e, (8, IN2), jnp.float32)  # [num_edges=8, 8]

    fwd = jax.jit(net1_forward)
    x_out, edge_out = fwd(x, edge_attr, params)
    jax.block_until_ready((x_out, edge_out))

    # Cross-check against plain-JAX reference.
    (w1t, b1), (w2t, b2) = params
    x_ref = x @ w1t + b1
    e_ref = edge_attr @ w2t + b2
    assert x_out.shape == (8, OUT1) and edge_out.shape == (8, OUT2)
    assert jnp.allclose(x_out, x_ref, atol=1e-5)
    assert jnp.allclose(edge_out, e_ref, atol=1e-5)

    print("KERNEL_OK")
</pallas_src>

<mosaic_0001>
module attributes {stable_mosaic.version = 11 : i64} {
  func.func @_net1_kernel(%arg0: i32, %arg1: memref<8x16xf32, #tpu.memory_space<vmem>>, %arg2: memref<16x32xf32, #tpu.memory_space<vmem>>, %arg3: memref<1x32xf32, #tpu.memory_space<vmem>>, %arg4: memref<8x8xf32, #tpu.memory_space<vmem>>, %arg5: memref<8x16xf32, #tpu.memory_space<vmem>>, %arg6: memref<1x16xf32, #tpu.memory_space<vmem>>, %arg7: memref<8x32xf32, #tpu.memory_space<vmem>>, %arg8: memref<8x16xf32, #tpu.memory_space<vmem>>) attributes {dimension_semantics = [#tpu.dimension_semantics<parallel>], iteration_bounds = array<i64: 1>, scalar_prefetch = 0 : i64, scratch_operands = 0 : i64, tpu.core_type = #tpu.core_type<tc>, window_params = [{transform_indices = @transform_0, window_bounds = array<i64: 8, 16>}, {pipeline_mode = #tpu.pipeline_mode<synchronous>, transform_indices = @transform_1, window_bounds = array<i64: 16, 32>}, {pipeline_mode = #tpu.pipeline_mode<synchronous>, transform_indices = @transform_2, window_bounds = array<i64: 1, 32>}, {transform_indices = @transform_3, window_bounds = array<i64: 8, 8>}, {pipeline_mode = #tpu.pipeline_mode<synchronous>, transform_indices = @transform_4, window_bounds = array<i64: 8, 16>}, {pipeline_mode = #tpu.pipeline_mode<synchronous>, transform_indices = @transform_5, window_bounds = array<i64: 1, 16>}, {transform_indices = @transform_6, window_bounds = array<i64: 8, 32>}, {transform_indices = @transform_7, window_bounds = array<i64: 8, 16>}]} {
    %c0 = arith.constant 0 : index
    %c0_0 = arith.constant 0 : index
    %0 = vector.load %arg1[%c0, %c0_0] : memref<8x16xf32, #tpu.memory_space<vmem>>, vector<8x16xf32>
    %c0_1 = arith.constant 0 : index
    %c0_2 = arith.constant 0 : index
    %1 = vector.load %arg2[%c0_1, %c0_2] : memref<16x32xf32, #tpu.memory_space<vmem>>, vector<16x32xf32>
    %cst = arith.constant dense<0.000000e+00> : vector<8x32xf32>
    %2 = tpu.matmul %0, %1, %cst {dimension_numbers = #tpu.dot_dimension_numbers<[1], [0], [0], [1], [0, 0, 1, 1], [], []>} : vector<8x16xf32>, vector<16x32xf32>, vector<8x32xf32> -> vector<8x32xf32>
    %c0_3 = arith.constant 0 : index
    %c0_4 = arith.constant 0 : index
    %3 = vector.load %arg3[%c0_3, %c0_4] : memref<1x32xf32, #tpu.memory_space<vmem>>, vector<1x32xf32>
    %4 = vector.broadcast %3 : vector<1x32xf32> to vector<8x32xf32>
    %5 = arith.addf %2, %4 : vector<8x32xf32>
    %c0_5 = arith.constant 0 : index
    %c0_6 = arith.constant 0 : index
    %6 = vector.load %arg7[%c0_5, %c0_6] : memref<8x32xf32, #tpu.memory_space<vmem>>, vector<8x32xf32>
    tpu.vector_store %arg7[%c0_5, %c0_6], %5 {strides = array<i32>} : memref<8x32xf32, #tpu.memory_space<vmem>>, vector<8x32xf32>,
    %c0_7 = arith.constant 0 : index
    %c0_8 = arith.constant 0 : index
    %7 = vector.load %arg4[%c0_7, %c0_8] : memref<8x8xf32, #tpu.memory_space<vmem>>, vector<8x8xf32>
    %c0_9 = arith.constant 0 : index
    %c0_10 = arith.constant 0 : index
    %8 = vector.load %arg5[%c0_9, %c0_10] : memref<8x16xf32, #tpu.memory_space<vmem>>, vector<8x16xf32>
    %cst_11 = arith.constant dense<0.000000e+00> : vector<8x16xf32>
    %9 = tpu.matmul %7, %8, %cst_11 {dimension_numbers = #tpu.dot_dimension_numbers<[1], [0], [0], [1], [0, 0, 1, 1], [], []>} : vector<8x8xf32>, vector<8x16xf32>, vector<8x16xf32> -> vector<8x16xf32>
    %c0_12 = arith.constant 0 : index
    %c0_13 = arith.constant 0 : index
    %10 = vector.load %arg6[%c0_12, %c0_13] : memref<1x16xf32, #tpu.memory_space<vmem>>, vector<1x16xf32>
    %11 = vector.broadcast %10 : vector<1x16xf32> to vector<8x16xf32>
    %12 = arith.addf %9, %11 : vector<8x16xf32>
    %c0_14 = arith.constant 0 : index
    %c0_15 = arith.constant 0 : index
    %13 = vector.load %arg8[%c0_14, %c0_15] : memref<8x16xf32, #tpu.memory_space<vmem>>, vector<8x16xf32>
    tpu.vector_store %arg8[%c0_14, %c0_15], %12 {strides = array<i32>} : memref<8x16xf32, #tpu.memory_space<vmem>>, vector<8x16xf32>,
    return
  }
  func.func @transform_0(%arg0: i32) -> (i32, i32) {
    %c0_i32 = arith.constant 0 : i32
    %c0_i32_0 = arith.constant 0 : i32
    return %arg0, %c0_i32 : i32, i32
  }
  func.func @transform_1(%arg0: i32) -> (i32, i32) {
    %c0_i32 = arith.constant 0 : i32
    %c0_i32_0 = arith.constant 0 : i32
    %c0_i32_1 = arith.constant 0 : i32
    return %c0_i32, %c0_i32_0 : i32, i32
  }
  func.func @transform_2(%arg0: i32) -> (i32, i32) {
    %c0_i32 = arith.constant 0 : i32
    %c0_i32_0 = arith.constant 0 : i32
    %c0_i32_1 = arith.constant 0 : i32
    return %c0_i32, %c0_i32_0 : i32, i32
  }
  func.func @transform_3(%arg0: i32) -> (i32, i32) {
    %c0_i32 = arith.constant 0 : i32
    %c0_i32_0 = arith.constant 0 : i32
    return %arg0, %c0_i32 : i32, i32
  }
  func.func @transform_4(%arg0: i32) -> (i32, i32) {
    %c0_i32 = arith.constant 0 : i32
    %c0_i32_0 = arith.constant 0 : i32
    %c0_i32_1 = arith.constant 0 : i32
    return %c0_i32, %c0_i32_0 : i32, i32
  }
  func.func @transform_5(%arg0: i32) -> (i32, i32) {
    %c0_i32 = arith.constant 0 : i32
    %c0_i32_0 = arith.constant 0 : i32
    %c0_i32_1 = arith.constant 0 : i32
    return %c0_i32, %c0_i32_0 : i32, i32
  }
  func.func @transform_6(%arg0: i32) -> (i32, i32) {
    %c0_i32 = arith.constant 0 : i32
    %c0_i32_0 = arith.constant 0 : i32
    return %arg0, %c0_i32 : i32, i32
  }
  func.func @transform_7(%arg0: i32) -> (i32, i32) {
    %c0_i32 = arith.constant 0 : i32
    %c0_i32_0 = arith.constant 0 : i32
    return %arg0, %c0_i32 : i32, i32
  }
}

</mosaic_0001>

<llo_original>
// kernel: net1_forward.1
$region0: #{net1_forward.1}
  #allocation0 [shape = 'u32[]', space=smem, size = 0x4, offset = 0x4, fixed_abs, tag = 'smem constant byte address 0x4 - core index']
  #allocation1 [shape = 'u32[72,128]{1,0:T(1,128)}', space=vmem, size = 0x9000, scoped, tag = 'internal scratch']
  %s0 = inlined_call_operand.hbm [shape: f32[8,16], index: 0, kind: input, shape index: {}]
  %s1 = inlined_call_operand.hbm [shape: f32[16,32], index: 1, kind: input, shape index: {}]
  %s2 = inlined_call_operand.vmem [shape: f32[1,32], index: 2, kind: input, shape index: {}]
  %s3 = inlined_call_operand.hbm [shape: f32[8,8], index: 3, kind: input, shape index: {}]
  %s4 = inlined_call_operand.hbm [shape: f32[8,16], index: 4, kind: input, shape index: {}]
  %s5 = inlined_call_operand.vmem [shape: f32[1,16], index: 5, kind: input, shape index: {}]
  %s6 = inlined_call_operand.hbm [shape: f32[8,32], index: 6, kind: output, shape index: {0}]
  %s7 = inlined_call_operand.hbm [shape: f32[8,16], index: 7, kind: output, shape index: {1}]
  %8 = xla_tuple %s6, %s7
  %s9 = sld [smem:[#allocation0]]
  $region58: #{net1_forward.1} parent=0
    _
  %s11 = ssub.s32 1, %s9
  %s12 = scalar_select 0, %s11, %s9
  $region1: #{net1_forward.1} parent=0
    #allocation2 [shape = 'u8[4096]{0}', space=vmem, size = 0x1000, scoped, tag = 'input window, operand 0, single buffered']
    #allocation3 [shape = 's32[1]{0}', space=sflag, size = 0x4, scoped, tag = 'scoped memory for net1_forward.1']
    #allocation4 [shape = 's32[1]{0}', space=sflag, size = 0x4, scoped, tag = 'scoped memory for net1_forward.1']
    #allocation5 [shape = 'u8[8192]{0}', space=vmem, size = 0x2000, scoped, tag = 'input window, operand 1, single buffered']
    #allocation6 [shape = 's32[1]{0}', space=sflag, size = 0x4, scoped, tag = 'scoped memory for net1_forward.1']
    #allocation7 [shape = 'u8[4096]{0}', space=vmem, size = 0x1000, scoped, tag = 'input window, operand 3, single buffered']
    #allocation8 [shape = 'u8[4096]{0}', space=vmem, size = 0x1000, scoped, tag = 'input window, operand 4, single buffered']
    #allocation9 [shape = 's32[1]{0}', space=sflag, size = 0x4, scoped, tag = 'scoped memory for net1_forward.1']
    #allocation10 [shape = 'u8[4096]{0}', space=vmem, size = 0x1000, scoped, tag = 'output window, operand 0, single buffered']
    #allocation11 [shape = 'u8[4096]{0}', space=vmem, size = 0x1000, scoped, tag = 'output window, operand 1, single buffered']
    #allocation12 [shape = 's32[1]{0}', space=sflag, size = 0x4, scoped, tag = 'scoped memory for net1_forward.1']
    %13 = vsyncpa [#allocation3], 0
    %14 = vsyncpa [#allocation6], 0
    %15 = vsyncpa [#allocation9], 0
    %16 = vsyncpa [#allocation4], 0
    %17 = vsyncpa [#allocation12], 0
    // Predicated region
    $region2: #{net1_forward.1} parent=1 // pred_check
      _
    $region3: #{net1_forward.1} parent=1 // pred_check_branch
      %19 = sbr.rel (0) target = $region5
    $region4: #{net1_forward.1} parent=1 // pred_region
      %21 = vsyncadd [#allocation3], 0
      %s23 = sshll.u32 %s0, 4
      %s24 = int_to_ptr.hbm [resolvable:$true] %s23
      %s25 = sshll.u32 [#allocation2], 4
      %s26 = int_to_ptr.vmem [resolvable:$true] %s25
      %28 = dma.hbm_to_vmem [thread:$0]  %s24, 128, %s26, [#allocation3]
    $region5: #{net1_forward.1} parent=1 // pred_fallthru
      _
    // Predicated region
    $region6: #{net1_forward.1} parent=1 // pred_check
      _
    $region7: #{net1_forward.1} parent=1 // pred_check_branch
      %30 = sbr.rel (0) target = $region9
    $region8: #{net1_forward.1} parent=1 // pred_region
      %32 = vsyncadd [#allocation6], 0
      %s33 = sshll.u32 %s1, 4
      %s34 = int_to_ptr.hbm [resolvable:$true] %s33
      %s35 = sshll.u32 [#allocation5], 4
      %s36 = int_to_ptr.vmem [resolvable:$true] %s35
      %41 = dma.hbm_to_vmem [thread:$0]  %s34, 256, %s36, [#allocation6], 128, 128, 8
    $region9: #{net1_forward.1} parent=1 // pred_fallthru
      _
    // Predicated region
    $region10: #{net1_forward.1} parent=1 // pred_check
      _
    $region11: #{net1_forward.1} parent=1 // pred_check_branch
      %43 = sbr.rel (0) target = $region13
    $region12: #{net1_forward.1} parent=1 // pred_region
      _
    $region13: #{net1_forward.1} parent=1 // pred_fallthru
      _
    // Predicated region
    $region14: #{net1_forward.1} parent=1 // pred_check
      _
    $region15: #{net1_forward.1} parent=1 // pred_check_branch
      %45 = sbr.rel (0) target = $region17
    $region16: #{net1_forward.1} parent=1 // pred_region
      %47 = vsyncadd [#allocation6], 0
      %s49 = sshll.u32 %s3, 4
      %s50 = int_to_ptr.hbm [resolvable:$true] %s49
      %s51 = sshll.u32 [#allocation7], 4
      %s52 = int_to_ptr.vmem [resolvable:$true] %s51
      %54 = dma.hbm_to_vmem [thread:$0]  %s50, 128, %s52, [#allocation6]
    $region17: #{net1_forward.1} parent=1 // pred_fallthru
      _
    // Predicated region
    $region18: #{net1_forward.1} parent=1 // pred_check
      _
    $region19: #{net1_forward.1} parent=1 // pred_check_branch
      %56 = sbr.rel (0) target = $region21
    $region20: #{net1_forward.1} parent=1 // pred_region
      %58 = vsyncadd [#allocation9], 0
      %s60 = sshll.u32 %s4, 4
      %s61 = int_to_ptr.hbm [resolvable:$true] %s60
      %s62 = sshll.u32 [#allocation8], 4
      %s63 = int_to_ptr.vmem [resolvable:$true] %s62
      %65 = dma.hbm_to_vmem [thread:$0]  %s61, 128, %s63, [#allocation9]
    $region21: #{net1_forward.1} parent=1 // pred_fallthru
      _
    // Predicated region
    $region22: #{net1_forward.1} parent=1 // pred_check
      _
    $region23: #{net1_forward.1} parent=1 // pred_check_branch
      %67 = sbr.rel (0) target = $region25
    $region24: #{net1_forward.1} parent=1 // pred_region
      _
    $region25: #{net1_forward.1} parent=1 // pred_fallthru
      _
    // Predicated region
    $region26: #{net1_forward.1} parent=1 // pred_check
      _
    $region27: #{net1_forward.1} parent=1 // pred_check_branch
      %69 = sbr.rel (0) target = $region29
    $region28: #{net1_forward.1} parent=1 // pred_region
      %71 = dma.done [#allocation3], 128
    $region29: #{net1_forward.1} parent=1 // pred_fallthru
      _
    // Predicated region
    $region30: #{net1_forward.1} parent=1 // pred_check
      _
    $region31: #{net1_forward.1} parent=1 // pred_check_branch
      %73 = sbr.rel (0) target = $region33
    $region32: #{net1_forward.1} parent=1 // pred_region
      %75 = dma.done [#allocation6], 256
    $region33: #{net1_forward.1} parent=1 // pred_fallthru
      _
    // Predicated region
    $region34: #{net1_forward.1} parent=1 // pred_check
      _
    $region35: #{net1_forward.1} parent=1 // pred_check_branch
      %77 = sbr.rel (0) target = $region37
    $region36: #{net1_forward.1} parent=1 // pred_region
      %79 = dma.done [#allocation6], 128
    $region37: #{net1_forward.1} parent=1 // pred_fallthru
      _
    // Predicated region
    $region38: #{net1_forward.1} parent=1 // pred_check
      _
    $region39: #{net1_forward.1} parent=1 // pred_check_branch
      %81 = sbr.rel (0) target = $region41
    $region40: #{net1_forward.1} parent=1 // pred_region
      %83 = dma.done [#allocation9], 128
    $region41: #{net1_forward.1} parent=1 // pred_fallthru
      _
    %v84 = vld [vmem:[#allocation2] sm:$0xff]
    %v85 = vld [vmem:[#allocation5] sm:$0xff]
    %v86 = vld [vmem:[#allocation5 + $0x8] sm:$0xff]
    %v87 = vld [vmem:[%s2] sm:$0x1]
    %v89 = vperm.slane %v87, 0
    %vm91 = vcmask 130048
    %v93 = vsel %vm91, %v84, 0
    %95 = vmatpush.msra.mxu0 0.0
    %96 = vmatpush.msra.mxu0 0.0
    %97 = vmatpush.msra.mxu0 0.0
    %98 = vmatpush.msra.mxu0 0.0
    %99 = vmatpush.msra.mxu0 0.0
    %100 = vmatpush.msra.mxu0 0.0
    %101 = vmatpush.msra.mxu0 0.0
    %102 = vmatpush.msra.mxu0 0.0
    %103 = vmatpush.msra.mxu0 0.0
    %104 = vmatpush.msra.mxu0 0.0
    %105 = vmatpush.msra.mxu0 0.0
    %106 = vmatpush.msra.mxu0 0.0
    %107 = vmatpush.msra.mxu0 0.0
    %108 = vmatpush.msra.mxu0 0.0
    %109 = vmatpush.msra.mxu0 %v86
    %110 = vmatpush.msra.mxu0 %v85
    %111 = vmatmul.f32.gmra.mxu0 %v93
    %v112 = vpop.f32.mrf.mxu0
    %v113 = vadd.f32 %v89, %v112
    %114 = vdwg.mxu0
    %vm115 = vcmask 261120
    %116 = vst.msk [vmem:[#allocation10] sm:$0xff] %vm115, %v113
    %v117 = vld [vmem:[#allocation7] sm:$0xff]
    %v118 = vld [vmem:[#allocation8] sm:$0xff]
    %v119 = vld [vmem:[%s5] sm:$0x1]
    %v121 = vperm.slane %v119, 0
    %vm123 = vcmask 64512
    %v125 = vsel %vm123, %v117, 0
    %127 = vmatpush.msra.mxu0 0.0
    %128 = vmatpush.msra.mxu0 0.0
    %129 = vmatpush.msra.mxu0 0.0
    %130 = vmatpush.msra.mxu0 0.0
    %131 = vmatpush.msra.mxu0 0.0
    %132 = vmatpush.msra.mxu0 0.0
    %133 = vmatpush.msra.mxu0 0.0
    %134 = vmatpush.msra.mxu0 0.0
    %135 = vmatpush.msra.mxu0 0.0
    %136 = vmatpush.msra.mxu0 0.0
    %137 = vmatpush.msra.mxu0 0.0
    %138 = vmatpush.msra.mxu0 0.0
    %139 = vmatpush.msra.mxu0 0.0
    %140 = vmatpush.msra.mxu0 0.0
    %141 = vmatpush.msra.mxu0 0.0
    %142 = vmatpush.msra.mxu0 %v118
    %143 = vmatmul.f32.gmra.mxu0 %v125
    %v144 = vpop.f32.mrf.mxu0
    %v145 = vadd.f32 %v121, %v144
    %146 = vdwg.mxu0
    %147 = vst.msk [vmem:[#allocation11] sm:$0xff] %vm91, %v145
    // Predicated region
    $region42: #{net1_forward.1} parent=1 // pred_check
      _
    $region43: #{net1_forward.1} parent=1 // pred_check_branch
      %149 = sbr.rel (0) target = $region45
    $region44: #{net1_forward.1} parent=1 // pred_region
      %151 = vsyncadd [#allocation4], 0
      %s153 = sshll.u32 [#allocation10], 4
      %s154 = int_to_ptr.vmem [resolvable:$true] %s153
      %s155 = sshll.u32 %s6, 4
      %s156 = int_to_ptr.hbm [resolvable:$true] %s155
      %158 = dma.vmem_to_hbm [thread:$0]  %s154, 128, %s156, [#allocation4]
    $region45: #{net1_forward.1} parent=1 // pred_fallthru
      _
    // Predicated region
    $region46: #{net1_forward.1} parent=1 // pred_check
      _
    $region47: #{net1_forward.1} parent=1 // pred_check_branch
      %160 = sbr.rel (0) target = $region49
    $region48: #{net1_forward.1} parent=1 // pred_region
      %162 = vsyncadd [#allocation12], 0
      %s164 = sshll.u32 [#allocation11], 4
      %s165 = int_to_ptr.vmem [resolvable:$true] %s164
      %s166 = sshll.u32 %s7, 4
      %s167 = int_to_ptr.hbm [resolvable:$true] %s166
      %169 = dma.vmem_to_hbm [thread:$0]  %s165, 128, %s167, [#allocation12]
    $region49: #{net1_forward.1} parent=1 // pred_fallthru
      _
    // Predicated region
    $region50: #{net1_forward.1} parent=1 // pred_check
      _
    $region51: #{net1_forward.1} parent=1 // pred_check_branch
      %171 = sbr.rel (0) target = $region53
    $region52: #{net1_forward.1} parent=1 // pred_region
      %173 = dma.done [#allocation4], 128
    $region53: #{net1_forward.1} parent=1 // pred_fallthru
      _
    // Predicated region
    $region54: #{net1_forward.1} parent=1 // pred_check
      _
    $region55: #{net1_forward.1} parent=1 // pred_check_branch
      %175 = sbr.rel (0) target = $region57
    $region56: #{net1_forward.1} parent=1 // pred_region
      %177 = dma.done [#allocation12], 128
    $region57: #{net1_forward.1} parent=1 // pred_fallthru
      _
    %178 = vsyncpa [#allocation3], 1
    %179 = vsyncpa [#allocation6], 1
    %180 = vsyncpa [#allocation9], 1
    %181 = vsyncpa [#allocation4], 1
    %182 = vsyncpa [#allocation12], 1

</llo_original>
